<compile_context>
chip_gen: v7x
topology: tpu7x:2x2x1
jax: 0.10.0
libtpu: 0.0.40
codegen_flags: <defaults>
</compile_context>

<pallas_src>
import math

import jax
import jax.numpy as jnp
from jax.experimental import pallas as pl
from jax.experimental.pallas import tpu as pltpu


# --------------------------------------------------------------------------- helpers

def _vmem_budget():
    """(capacity, usable budget) in bytes; conservative default if query fails."""
    cap = 64 << 20                              # safe on v5e/v6e/v7x
    try:
        cap = int(pltpu.get_tpu_info().vmem_capacity_bytes)
    except Exception:
        pass
    return cap, (cap * 3) // 4


def _largest_divisor_tile(n, align, max_tile):
    """Largest t dividing n with t <= max_tile and (t == n or t % align == 0)."""
    best = None
    for t in range(1, n + 1):
        if n % t:
            continue
        if t != n and t % align:
            continue
        if t <= max_tile:
            best = t
    return n if best is None else best


def _pick_tiles(c, d, hw, itemsize, budget):
    """Block sizes for the streamed (multi-pass) path."""
    target = min(16 << 20, max(1 << 20, (budget - (8 << 20)) // 4))
    max_hw = max(128, target // (itemsize * c * d))
    tile_hw = _largest_divisor_tile(hw, 128, max_hw)
    tile_d = d
    if c * tile_d * tile_hw * itemsize > 2 * target:
        max_d = max(1, target // (itemsize * c * tile_hw))
        tile_d = _largest_divisor_tile(d, 8, max_d)
    return tile_d, tile_hw


def _foreach_lane_group(n_groups, fn):
    """Run fn(lane_offset) for every 128-lane group (static unroll when short)."""
    if n_groups <= 8:
        for g in range(n_groups):
            fn(g * 128)
    else:
        def body(g, carry):
            fn(pl.multiple_of(g * 128, 128))
            return carry
        jax.lax.fori_loop(0, n_groups, body, 0)


# --------------------------------------------------------------------------- kernels

def _make_fused_kernel(c, d, k, p, inv_hw, out_dtype, n_groups):
    """pool + k*k conv + sigmoid + scale for one batch, whole slab in VMEM."""

    def fused_kernel(w_ref, x_ref, o_ref, pad_ref, *acc):
        # ---- mean over h*w (f32 accumulation; VPU-only per 128-lane group) ----
        if n_groups is not None:
            acc_ref = acc[0]                                   # (c, d, 128) f32
            acc_ref[...] = jnp.zeros_like(acc_ref)

            def pool_group(off):
                acc_ref[...] += x_ref[:, :, pl.ds(off, 128)].astype(jnp.float32)

            _foreach_lane_group(n_groups, pool_group)
            pooled = jnp.sum(acc_ref[...], axis=-1) * inv_hw   # (c, d)
        else:
            pooled = jnp.sum(x_ref[...].astype(jnp.float32), axis=-1) * inv_hw

        # ---- k x k conv over the zero-padded (c, d) map + sigmoid ----
        pad_ref[...] = jnp.zeros_like(pad_ref)
        pad_ref[p:p + c, p:p + d] = pooled
        conv = jnp.zeros((c, d), jnp.float32)
        for i in range(k):
            for j in range(k):
                conv = conv + w_ref[i * k + j] * pad_ref[i:i + c, j:j + d]
        attn = jax.nn.sigmoid(conv).astype(out_dtype)          # (c, d)

        # ---- y = attn * x, streamed per 128-lane group ----
        if n_groups is not None:
            ab = jnp.broadcast_to(attn[:, :, None], (c, d, 128))

            def scale_group(off):
                o_ref[:, :, pl.ds(off, 128)] = x_ref[:, :, pl.ds(off, 128)] * ab

            _foreach_lane_group(n_groups, scale_group)
        else:
            o_ref[...] = x_ref[...] * attn[:, :, None]

    return fused_kernel


def _make_pool_kernel(inv_hw, cd_layout, n_groups):
    """Streamed mean over (h, w): hw is the innermost ('arbitrary') grid axis."""

    def pool_kernel(x_ref, o_ref, acc_ref):
        hw_i = pl.program_id(2)

        @pl.when(hw_i == 0)
        def _init():
            acc_ref[...] = jnp.zeros_like(acc_ref)

        if n_groups is not None:
            def pool_group(off):
                acc_ref[...] += x_ref[:, :, pl.ds(off, 128)].astype(jnp.float32)

            _foreach_lane_group(n_groups, pool_group)
        else:
            acc_ref[...] += jnp.sum(x_ref[...].astype(jnp.float32), axis=-1)

        @pl.when(hw_i == pl.num_programs(2) - 1)
        def _fin():
            red = acc_ref[...]
            if n_groups is not None:
                red = jnp.sum(red, axis=-1)                    # (c, tile_d)
            red = red * inv_hw
            o_ref[...] = red if cd_layout else jnp.transpose(red, (1, 0))

    return pool_kernel


def _make_scale_kernel(c, tile_d, cd_layout, n_groups):
    """y = attn * x, attn broadcast over the lane-dense h*w axis."""

    def scale_kernel(x_ref, a_ref, o_ref):
        a = a_ref[...]                                         # (c, tile_d) / (tile_d, c)
        if not cd_layout:
            a = jnp.transpose(a, (1, 0))
        if n_groups is not None:
            ab = jnp.broadcast_to(a[:, :, None], (c, tile_d, 128))

            def scale_group(off):
                o_ref[:, :, pl.ds(off, 128)] = x_ref[:, :, pl.ds(off, 128)] * ab

            _foreach_lane_group(n_groups, scale_group)
        else:
            o_ref[...] = x_ref[...] * a[:, :, None]

    return scale_kernel


def _conv_sigmoid(pooled_cd, conv_w):
    """sigmoid(Conv2d(1,1,k,pad=k//2,bias=False)) over the tiny (c, d) map (plain JAX)."""
    bq, c, d = pooled_cd.shape
    k = conv_w.shape[0]
    p = k // 2
    pad = jnp.pad(pooled_cd, ((0, 0), (p, p), (p, p)))
    out = jnp.zeros((bq, c, d), jnp.float32)
    for i in range(k):
        for j in range(k):
            out = out + conv_w[i, j] * pad[:, i:i + c, j:j + d]
    return jax.nn.sigmoid(out)


# --------------------------------------------------------------------------- forward

def eca_block_forward(x, conv_w, *, force_multi_pass=False, _force_tiles=None):
    """x: (b, c, d, h, w); conv_w: (k, k) = Conv2d(1, 1, k, bias=False) weight."""
    b, c, d, h, w = x.shape
    hw = h * w
    k = int(conv_w.shape[0])
    p = k // 2
    dtype = x.dtype
    itemsize = x.dtype.itemsize
    inv_hw = 1.0 / float(hw)

    conv_w = conv_w.astype(jnp.float32)
    w_flat = conv_w.reshape(k * k)
    x4 = x.reshape(b, c, d, hw)                 # free reshape; h*w is lane-dense

    cap, budget = _vmem_budget()
    hw_groups = hw // 128 if hw % 128 == 0 else None

    # ------------- single-pass fused path (2x x-bytes of HBM traffic) ---------
    slab = c * d * hw * itemsize
    extra = (4 * c * d * 512) if hw_groups is not None else (3 * c * d * hw * 4)
    fused_need = 4 * slab + extra + (4 << 20)
    if not force_multi_pass and _force_tiles is None and fused_need <= budget:
        scratch = [pltpu.VMEM((c + 2 * p, d + 2 * p), jnp.float32)]
        if hw_groups is not None:
            scratch.append(pltpu.VMEM((c, d, 128), jnp.float32))
        y = pl.pallas_call(
            _make_fused_kernel(c, d, k, p, inv_hw, dtype, hw_groups),
            out_shape=jax.ShapeDtypeStruct((b, c, d, hw), dtype),
            grid=(b,),
            in_specs=[
                pl.BlockSpec(memory_space=pltpu.MemorySpace.SMEM),   # (k*k,) weights
                pl.BlockSpec((None, c, d, hw), lambda bi: (bi, 0, 0, 0)),
            ],
            out_specs=pl.BlockSpec((None, c, d, hw), lambda bi: (bi, 0, 0, 0)),
            scratch_shapes=scratch,
            compiler_params=pltpu.CompilerParams(
                dimension_semantics=("parallel",),
                vmem_limit_bytes=int(min(max(budget, fused_need), cap))),
        )(w_flat, x4)
        return y.reshape(b, c, d, h, w)

    # ------------- streamed multi-pass fallback (3x x-bytes) ------------------
    if _force_tiles is not None:
        tile_d, tile_hw = _force_tiles
    else:
        tile_d, tile_hw = _pick_tiles(c, d, hw, itemsize, budget)
    n_d = d // tile_d
    n_hw = hw // tile_hw
    cd_layout = tile_d == d                    # no transposes when d is untiled
    n_groups = tile_hw // 128 if tile_hw % 128 == 0 else None
    block_bytes = c * tile_d * tile_hw * itemsize

    # pass 1: mean over (h, w)
    acc_bytes = c * tile_d * (512 if n_groups is not None else 4)
    pool_tmp = 0 if n_groups is not None else c * tile_d * tile_hw * 4
    pool_need = 2 * block_bytes + acc_bytes + pool_tmp + (2 << 20)
    if cd_layout:
        pooled_shape = (b, c, d)
        pooled_spec = pl.BlockSpec((None, c, d), lambda bi, di, hi: (bi, 0, 0))
    else:
        pooled_shape = (b, d, c)
        pooled_spec = pl.BlockSpec((None, tile_d, c), lambda bi, di, hi: (bi, di, 0))
    acc_shape = (c, tile_d, 128) if n_groups is not None else (c, tile_d)

    pooled = pl.pallas_call(
        _make_pool_kernel(inv_hw, cd_layout, n_groups),
        out_shape=jax.ShapeDtypeStruct(pooled_shape, jnp.float32),
        grid=(b, n_d, n_hw),
        in_specs=[pl.BlockSpec((None, c, tile_d, tile_hw),
                               lambda bi, di, hi: (bi, 0, di, hi))],
        out_specs=pooled_spec,
        scratch_shapes=[pltpu.VMEM(acc_shape, jnp.float32)],
        compiler_params=pltpu.CompilerParams(
            dimension_semantics=("parallel", "parallel", "arbitrary"),
            vmem_limit_bytes=int(min(max(budget, pool_need), cap))),
    )(x4)

    # tiny k x k conv + sigmoid over the (c, d) map: plain JAX glue (b*c*d elems)
    pooled_cd = pooled if cd_layout else jnp.transpose(pooled, (0, 2, 1))
    attn_cd = _conv_sigmoid(pooled_cd, conv_w)
    attn = (attn_cd if cd_layout else jnp.transpose(attn_cd, (0, 2, 1))).astype(dtype)
    attn_spec = (pl.BlockSpec((None, c, d), lambda bi, di, hi: (bi, 0, 0)) if cd_layout
                 else pl.BlockSpec((None, tile_d, c), lambda bi, di, hi: (bi, di, 0)))

    # pass 2: y = attn * x
    scale_tmp = 3 * c * tile_d * 512 if n_groups is not None else 2 * block_bytes
    scale_need = 4 * block_bytes + scale_tmp + (2 << 20)
    y = pl.pallas_call(
        _make_scale_kernel(c, tile_d, cd_layout, n_groups),
        out_shape=jax.ShapeDtypeStruct((b, c, d, hw), dtype),
        grid=(b, n_d, n_hw),
        in_specs=[
            pl.BlockSpec((None, c, tile_d, tile_hw),
                         lambda bi, di, hi: (bi, 0, di, hi)),
            attn_spec,
        ],
        out_specs=pl.BlockSpec((None, c, tile_d, tile_hw),
                               lambda bi, di, hi: (bi, 0, di, hi)),
        compiler_params=pltpu.CompilerParams(
            dimension_semantics=("parallel", "parallel", "parallel"),
            vmem_limit_bytes=int(min(max(budget, scale_need), cap))),
    )(x4, attn)
    return y.reshape(b, c, d, h, w)


# --------------------------------------------------------------------------- reference

def _reference(x, conv_w):
    """Pure-JAX replica of the PyTorch forward (conv2d == cross-correlation, zero pad)."""
    b, c, d, h, w = x.shape
    k = conv_w.shape[0]
    p = k // 2
    xf = x.astype(jnp.float32)
    avg = jnp.mean(xf, axis=(3, 4))                      # (b, c, d)
    pad = jnp.pad(avg, ((0, 0), (p, p), (p, p)))
    out = jnp.zeros((b, c, d), jnp.float32)
    for i in range(k):
        for j in range(k):
            out = out + conv_w[i, j] * pad[:, i:i + c, j:j + d]
    attn = jax.nn.sigmoid(out)
    return attn[:, :, :, None, None] * xf


if __name__ == "__main__":
    # Small shapes consistent with the module (channel=16 -> kernel_size=3).
    b, c, d, h, w = 2, 16, 8, 16, 16
    gamma, b_hyper = 2, 1
    k = int(abs((math.log(c, 2) + b_hyper) / gamma))
    k = k if k % 2 else k + 1            # -> 3 for c=16
    assert k == 3

    key = jax.random.PRNGKey(0)
    kx, kw = jax.random.split(key)
    x = jax.random.normal(kx, (b, c, d, h, w), dtype=jnp.float32)
    conv_w = jax.random.normal(kw, (k, k), dtype=jnp.float32) * 0.3

    ref = _reference(x, conv_w)

    # 1) fused single-pass path (default for small/medium slabs)
    out = jax.block_until_ready(eca_block_forward(x, conv_w))
    assert out.shape == (b, c, d, h, w) and out.dtype == x.dtype
    assert jnp.allclose(out, ref, atol=1e-5, rtol=1e-5), "fused path mismatch"

    # 2) streamed multi-pass fallback (pool kernel + jnp conv glue + scale kernel)
    out2 = jax.block_until_ready(eca_block_forward(x, conv_w, force_multi_pass=True))
    assert jnp.allclose(out2, ref, atol=1e-5, rtol=1e-5), "multi-pass mismatch"

    # 3) fallback with tiled d (exercises the (b, d, c) pooled layout + transposes)
    x2 = jax.random.normal(kx, (2, 16, 16, 8, 16), dtype=jnp.float32)
    ref2 = _reference(x2, conv_w)
    out3 = jax.block_until_ready(
        eca_block_forward(x2, conv_w, force_multi_pass=True, _force_tiles=(8, 128)))
    assert jnp.allclose(out3, ref2, atol=1e-5, rtol=1e-5), "tiled-d path mismatch"

    # 4) native bf16 streaming (output stays bf16)
    xb = x.astype(jnp.bfloat16)
    outb = jax.block_until_ready(eca_block_forward(xb, conv_w))
    refb = _reference(xb.astype(jnp.float32), conv_w)
    assert outb.dtype == jnp.bfloat16
    assert jnp.allclose(outb.astype(jnp.float32), refb, atol=5e-2, rtol=5e-2), \
        "bf16 path mismatch"

    print("KERNEL_OK")
</pallas_src>

<mosaic_0001>
module attributes {stable_mosaic.version = 11 : i64} {
  func.func @fused_kernel(%arg0: i32, %arg1: memref<9xf32, #tpu.memory_space<smem>>, %arg2: memref<1x16x8x256xf32, #tpu.memory_space<vmem>>, %arg3: memref<1x16x8x256xf32, #tpu.memory_space<vmem>>, %arg4: memref<18x10xf32, #tpu.memory_space<vmem>>, %arg5: memref<16x8x128xf32, #tpu.memory_space<vmem>>) attributes {dimension_semantics = [#tpu.dimension_semantics<parallel>], iteration_bounds = array<i64: 2>, scalar_prefetch = 0 : i64, scratch_operands = 2 : i64, tpu.core_type = #tpu.core_type<tc>, window_params = [{transform_indices = @transform_0, window_bounds = array<i64: 9>}, {transform_indices = @transform_1, window_bounds = array<i64: 1, 16, 8, 256>}, {transform_indices = @transform_2, window_bounds = array<i64: 1, 16, 8, 256>}]} {
    %cst = arith.constant 0.000000e+00 : f32
    %0 = vector.broadcast %cst : f32 to vector<16x8x128xf32>
    %c0 = arith.constant 0 : index
    %c0_0 = arith.constant 0 : index
    %c0_1 = arith.constant 0 : index
    %1 = vector.load %arg5[%c0, %c0_0, %c0_1] : memref<16x8x128xf32, #tpu.memory_space<vmem>>, vector<16x8x128xf32>
    tpu.vector_store %arg5[%c0, %c0_0, %c0_1], %0 {strides = array<i32>} : memref<16x8x128xf32, #tpu.memory_space<vmem>>, vector<16x8x128xf32>,
    %c0_2 = arith.constant 0 : index
    %c0_3 = arith.constant 0 : index
    %c0_4 = arith.constant 0 : index
    %2 = vector.load %arg5[%c0_2, %c0_3, %c0_4] : memref<16x8x128xf32, #tpu.memory_space<vmem>>, vector<16x8x128xf32>
    %c0_5 = arith.constant 0 : index
    %c0_6 = arith.constant 0 : index
    %c0_7 = arith.constant 0 : index
    %c0_8 = arith.constant 0 : index
    %3 = vector.load %arg2[%c0_5, %c0_6, %c0_7, %c0_8] : memref<1x16x8x256xf32, #tpu.memory_space<vmem>>, vector<1x16x8x128xf32>
    %4 = vector.shape_cast %3 : vector<1x16x8x128xf32> to vector<16x8x128xf32>
    %5 = arith.addf %2, %4 : vector<16x8x128xf32>
    %c0_9 = arith.constant 0 : index
    %c0_10 = arith.constant 0 : index
    %c0_11 = arith.constant 0 : index
    %6 = vector.load %arg5[%c0_9, %c0_10, %c0_11] : memref<16x8x128xf32, #tpu.memory_space<vmem>>, vector<16x8x128xf32>
    tpu.vector_store %arg5[%c0_9, %c0_10, %c0_11], %5 {strides = array<i32>} : memref<16x8x128xf32, #tpu.memory_space<vmem>>, vector<16x8x128xf32>,
    %c0_12 = arith.constant 0 : index
    %c0_13 = arith.constant 0 : index
    %c0_14 = arith.constant 0 : index
    %7 = vector.load %arg5[%c0_12, %c0_13, %c0_14] : memref<16x8x128xf32, #tpu.memory_space<vmem>>, vector<16x8x128xf32>
    %c0_15 = arith.constant 0 : index
    %c0_16 = arith.constant 0 : index
    %c0_17 = arith.constant 0 : index
    %c128 = arith.constant 128 : index
    %8 = vector.load %arg2[%c0_15, %c0_16, %c0_17, %c128] : memref<1x16x8x256xf32, #tpu.memory_space<vmem>>, vector<1x16x8x128xf32>
    %9 = vector.shape_cast %8 : vector<1x16x8x128xf32> to vector<16x8x128xf32>
    %10 = arith.addf %7, %9 : vector<16x8x128xf32>
    %c0_18 = arith.constant 0 : index
    %c0_19 = arith.constant 0 : index
    %c0_20 = arith.constant 0 : index
    %11 = vector.load %arg5[%c0_18, %c0_19, %c0_20] : memref<16x8x128xf32, #tpu.memory_space<vmem>>, vector<16x8x128xf32>
    tpu.vector_store %arg5[%c0_18, %c0_19, %c0_20], %10 {strides = array<i32>} : memref<16x8x128xf32, #tpu.memory_space<vmem>>, vector<16x8x128xf32>,
    %c0_21 = arith.constant 0 : index
    %c0_22 = arith.constant 0 : index
    %c0_23 = arith.constant 0 : index
    %12 = vector.load %arg5[%c0_21, %c0_22, %c0_23] : memref<16x8x128xf32, #tpu.memory_space<vmem>>, vector<16x8x128xf32>
    %cst_24 = arith.constant dense<0.000000e+00> : vector<16x8xf32>
    %13 = vector.multi_reduction <add>, %12, %cst_24 [2] : vector<16x8x128xf32> to vector<16x8xf32>
    %cst_25 = arith.constant 3.906250e-03 : f32
    %14 = vector.broadcast %cst_25 : f32 to vector<16x8xf32>
    %15 = arith.mulf %13, %14 : vector<16x8xf32>
    %cst_26 = arith.constant 0.000000e+00 : f32
    %16 = vector.broadcast %cst_26 : f32 to vector<18x10xf32>
    %c0_27 = arith.constant 0 : index
    %c0_28 = arith.constant 0 : index
    %17 = vector.load %arg4[%c0_27, %c0_28] : memref<18x10xf32, #tpu.memory_space<vmem>>, vector<18x10xf32>
    tpu.vector_store %arg4[%c0_27, %c0_28], %16 {strides = array<i32>} : memref<18x10xf32, #tpu.memory_space<vmem>>, vector<18x10xf32>,
    %c1 = arith.constant 1 : index
    %c1_29 = arith.constant 1 : index
    %18 = vector.load %arg4[%c1, %c1_29] : memref<18x10xf32, #tpu.memory_space<vmem>>, vector<16x8xf32>
    tpu.vector_store %arg4[%c1, %c1_29], %15 {strides = array<i32>} : memref<18x10xf32, #tpu.memory_space<vmem>>, vector<16x8xf32>,
    %cst_30 = arith.constant 0.000000e+00 : f32
    %19 = vector.broadcast %cst_30 : f32 to vector<16x8xf32>
    %c0_31 = arith.constant 0 : index
    %20 = memref.load %arg1[%c0_31] : memref<9xf32, #tpu.memory_space<smem>>
    %c0_32 = arith.constant 0 : index
    %c0_33 = arith.constant 0 : index
    %21 = vector.load %arg4[%c0_32, %c0_33] : memref<18x10xf32, #tpu.memory_space<vmem>>, vector<16x8xf32>
    %22 = vector.broadcast %20 : f32 to vector<16x8xf32>
    %23 = arith.mulf %22, %21 : vector<16x8xf32>
    %24 = arith.addf %19, %23 : vector<16x8xf32>
    %c1_34 = arith.constant 1 : index
    %25 = memref.load %arg1[%c1_34] : memref<9xf32, #tpu.memory_space<smem>>
    %c0_35 = arith.constant 0 : index
    %c1_36 = arith.constant 1 : index
    %26 = vector.load %arg4[%c0_35, %c1_36] : memref<18x10xf32, #tpu.memory_space<vmem>>, vector<16x8xf32>
    %27 = vector.broadcast %25 : f32 to vector<16x8xf32>
    %28 = arith.mulf %27, %26 : vector<16x8xf32>
    %29 = arith.addf %24, %28 : vector<16x8xf32>
    %c2 = arith.constant 2 : index
    %30 = memref.load %arg1[%c2] : memref<9xf32, #tpu.memory_space<smem>>
    %c0_37 = arith.constant 0 : index
    %c2_38 = arith.constant 2 : index
    %31 = vector.load %arg4[%c0_37, %c2_38] : memref<18x10xf32, #tpu.memory_space<vmem>>, vector<16x8xf32>
    %32 = vector.broadcast %30 : f32 to vector<16x8xf32>
    %33 = arith.mulf %32, %31 : vector<16x8xf32>
    %34 = arith.addf %29, %33 : vector<16x8xf32>
    %c3 = arith.constant 3 : index
    %35 = memref.load %arg1[%c3] : memref<9xf32, #tpu.memory_space<smem>>
    %c1_39 = arith.constant 1 : index
    %c0_40 = arith.constant 0 : index
    %36 = vector.load %arg4[%c1_39, %c0_40] : memref<18x10xf32, #tpu.memory_space<vmem>>, vector<16x8xf32>
    %37 = vector.broadcast %35 : f32 to vector<16x8xf32>
    %38 = arith.mulf %37, %36 : vector<16x8xf32>
    %39 = arith.addf %34, %38 : vector<16x8xf32>
    %c4 = arith.constant 4 : index
    %40 = memref.load %arg1[%c4] : memref<9xf32, #tpu.memory_space<smem>>
    %c1_41 = arith.constant 1 : index
    %c1_42 = arith.constant 1 : index
    %41 = vector.load %arg4[%c1_41, %c1_42] : memref<18x10xf32, #tpu.memory_space<vmem>>, vector<16x8xf32>
    %42 = vector.broadcast %40 : f32 to vector<16x8xf32>
    %43 = arith.mulf %42, %41 : vector<16x8xf32>
    %44 = arith.addf %39, %43 : vector<16x8xf32>
    %c5 = arith.constant 5 : index
    %45 = memref.load %arg1[%c5] : memref<9xf32, #tpu.memory_space<smem>>
    %c1_43 = arith.constant 1 : index
    %c2_44 = arith.constant 2 : index
    %46 = vector.load %arg4[%c1_43, %c2_44] : memref<18x10xf32, #tpu.memory_space<vmem>>, vector<16x8xf32>
    %47 = vector.broadcast %45 : f32 to vector<16x8xf32>
    %48 = arith.mulf %47, %46 : vector<16x8xf32>
    %49 = arith.addf %44, %48 : vector<16x8xf32>
    %c6 = arith.constant 6 : index
    %50 = memref.load %arg1[%c6] : memref<9xf32, #tpu.memory_space<smem>>
    %c2_45 = arith.constant 2 : index
    %c0_46 = arith.constant 0 : index
    %51 = vector.load %arg4[%c2_45, %c0_46] : memref<18x10xf32, #tpu.memory_space<vmem>>, vector<16x8xf32>
    %52 = vector.broadcast %50 : f32 to vector<16x8xf32>
    %53 = arith.mulf %52, %51 : vector<16x8xf32>
    %54 = arith.addf %49, %53 : vector<16x8xf32>
    %c7 = arith.constant 7 : index
    %55 = memref.load %arg1[%c7] : memref<9xf32, #tpu.memory_space<smem>>
    %c2_47 = arith.constant 2 : index
    %c1_48 = arith.constant 1 : index
    %56 = vector.load %arg4[%c2_47, %c1_48] : memref<18x10xf32, #tpu.memory_space<vmem>>, vector<16x8xf32>
    %57 = vector.broadcast %55 : f32 to vector<16x8xf32>
    %58 = arith.mulf %57, %56 : vector<16x8xf32>
    %59 = arith.addf %54, %58 : vector<16x8xf32>
    %c8 = arith.constant 8 : index
    %60 = memref.load %arg1[%c8] : memref<9xf32, #tpu.memory_space<smem>>
    %c2_49 = arith.constant 2 : index
    %c2_50 = arith.constant 2 : index
    %61 = vector.load %arg4[%c2_49, %c2_50] : memref<18x10xf32, #tpu.memory_space<vmem>>, vector<16x8xf32>
    %62 = vector.broadcast %60 : f32 to vector<16x8xf32>
    %63 = arith.mulf %62, %61 : vector<16x8xf32>
    %64 = arith.addf %59, %63 : vector<16x8xf32>
    %65 = arith.negf %64 : vector<16x8xf32>
    %66 = math.exp %65 : vector<16x8xf32>
    %cst_51 = arith.constant 1.000000e+00 : f32
    %67 = vector.broadcast %cst_51 : f32 to vector<16x8xf32>
    %68 = arith.addf %67, %66 : vector<16x8xf32>
    %69 = arith.divf %67, %68 : vector<16x8xf32>
    %70 = vector.shape_cast %69 : vector<16x8xf32> to vector<16x8x1xf32>
    %71 = vector.shape_cast %70 : vector<16x8x1xf32> to vector<16x8x1xf32>
    %72 = vector.broadcast %71 : vector<16x8x1xf32> to vector<16x8x128xf32>
    %c0_52 = arith.constant 0 : index
    %c0_53 = arith.constant 0 : index
    %c0_54 = arith.constant 0 : index
    %c0_55 = arith.constant 0 : index
    %73 = vector.load %arg2[%c0_52, %c0_53, %c0_54, %c0_55] : memref<1x16x8x256xf32, #tpu.memory_space<vmem>>, vector<1x16x8x128xf32>
    %74 = vector.shape_cast %73 : vector<1x16x8x128xf32> to vector<16x8x128xf32>
    %75 = arith.mulf %74, %72 : vector<16x8x128xf32>
    %c0_56 = arith.constant 0 : index
    %c0_57 = arith.constant 0 : index
    %c0_58 = arith.constant 0 : index
    %c0_59 = arith.constant 0 : index
    %76 = vector.load %arg3[%c0_56, %c0_57, %c0_58, %c0_59] : memref<1x16x8x256xf32, #tpu.memory_space<vmem>>, vector<1x16x8x128xf32>
    %77 = vector.shape_cast %76 : vector<1x16x8x128xf32> to vector<16x8x128xf32>
    %78 = vector.shape_cast %75 : vector<16x8x128xf32> to vector<1x16x8x128xf32>
    tpu.vector_store %arg3[%c0_56, %c0_57, %c0_58, %c0_59], %78 {strides = array<i32>} : memref<1x16x8x256xf32, #tpu.memory_space<vmem>>, vector<1x16x8x128xf32>,
    %c0_60 = arith.constant 0 : index
    %c0_61 = arith.constant 0 : index
    %c0_62 = arith.constant 0 : index
    %c128_63 = arith.constant 128 : index
    %79 = vector.load %arg2[%c0_60, %c0_61, %c0_62, %c128_63] : memref<1x16x8x256xf32, #tpu.memory_space<vmem>>, vector<1x16x8x128xf32>
    %80 = vector.shape_cast %79 : vector<1x16x8x128xf32> to vector<16x8x128xf32>
    %81 = arith.mulf %80, %72 : vector<16x8x128xf32>
    %c0_64 = arith.constant 0 : index
    %c0_65 = arith.constant 0 : index
    %c0_66 = arith.constant 0 : index
    %c128_67 = arith.constant 128 : index
    %82 = vector.load %arg3[%c0_64, %c0_65, %c0_66, %c128_67] : memref<1x16x8x256xf32, #tpu.memory_space<vmem>>, vector<1x16x8x128xf32>
    %83 = vector.shape_cast %82 : vector<1x16x8x128xf32> to vector<16x8x128xf32>
    %84 = vector.shape_cast %81 : vector<16x8x128xf32> to vector<1x16x8x128xf32>
    tpu.vector_store %arg3[%c0_64, %c0_65, %c0_66, %c128_67], %84 {strides = array<i32>} : memref<1x16x8x256xf32, #tpu.memory_space<vmem>>, vector<1x16x8x128xf32>,
    return
  }
  func.func @transform_0(%arg0: i32) -> i32 {
    %c0_i32 = arith.constant 0 : i32
    %c0_i32_0 = arith.constant 0 : i32
    return %c0_i32 : i32
  }
  func.func @transform_1(%arg0: i32) -> (i32, i32, i32, i32) {
    %c0_i32 = arith.constant 0 : i32
    %c0_i32_0 = arith.constant 0 : i32
    %c0_i32_1 = arith.constant 0 : i32
    %c0_i32_2 = arith.constant 0 : i32
    return %arg0, %c0_i32, %c0_i32_0, %c0_i32_1 : i32, i32, i32, i32
  }
  func.func @transform_2(%arg0: i32) -> (i32, i32, i32, i32) {
    %c0_i32 = arith.constant 0 : i32
    %c0_i32_0 = arith.constant 0 : i32
    %c0_i32_1 = arith.constant 0 : i32
    %c0_i32_2 = arith.constant 0 : i32
    return %arg0, %c0_i32, %c0_i32_0, %c0_i32_1 : i32, i32, i32, i32
  }
}

</mosaic_0001>

<llo_original>
// kernel: tpu_custom_call.1
$region0: #{tpu_custom_call.1}
  #allocation0 [shape = 'u32[]', space=smem, size = 0x4, offset = 0x4, fixed_abs, tag = 'smem constant byte address 0x4 - core index']
  #allocation1 [shape = 'u32[144,128]{1,0:T(1,128)}', space=vmem, size = 0x12000, scoped, tag = 'internal scratch']
  #allocation2 [shape = 'f32[18,10]{1,0:T(8,128)}', space=vmem, size = 0x3000, scoped, tag = 'scratch operand']
  #allocation3 [shape = 'f32[16,8,128]{2,1,0:T(8,128)}', space=vmem, size = 0x10000, scoped, tag = 'scratch operand']
  %s0 = inlined_call_operand.hbm [shape: f32[9], index: 0, kind: input, shape index: {}]
  %s1 = inlined_call_operand.hbm [shape: f32[2,16,8,256], index: 1, kind: input, shape index: {}]
  %s2 = inlined_call_operand.hbm [shape: f32[2,16,8,256], index: 2, kind: output, shape index: {}]
  %s3 = sld [smem:[#allocation0]]
  $region49: #{tpu_custom_call.1} parent=0
    _
  %s5 = ssub.s32 1, %s3
  %s6 = scalar_select 0, %s5, %s3
  $region1: #{tpu_custom_call.1} parent=0
    #allocation4 [shape = 'u8[512]{0}', space=smem, size = 0x200, scoped, tag = 'input window, operand 0, single buffered']
    #allocation5 [shape = 's32[2]{0}', space=sflag, size = 0x8, scoped, tag = 'scoped memory for tpu_custom_call.1']
    #allocation6 [shape = 's32[2]{0}', space=sflag, size = 0x8, scoped, tag = 'scoped memory for tpu_custom_call.1']
    #allocation7 [shape = 's32[2]{0}', space=sflag, size = 0x8, scoped, tag = 'scoped memory for tpu_custom_call.1']
    #allocation8 [shape = 'u8[262144]{0}', space=vmem, size = 0x40000, scoped, tag = 'input window, operand 1']
    #allocation9 [shape = 'u8[262144]{0}', space=vmem, size = 0x40000, scoped, tag = 'output window, operand 0']
    %7 = vsyncpa [#allocation7], 0
    %8 = vsyncpa [#allocation5], 0
    %s9 = scalar_lea.sflag [#allocation5], 1
    %10 = vsyncpa %s9, 0
    %11 = vsyncpa [#allocation6], 0
    %s12 = scalar_lea.sflag [#allocation6], 1
    %13 = vsyncpa %s12, 0
    loop: start=0, step=1, limit=4
    $region2: #{tpu_custom_call.1} parent=1 // loop_pre_header
      _
    $region3: #{tpu_custom_call.1} parent=1 // loop_header
      %s15 = sphi 0, %s19
      %p16 = scmp.ge.s32.totalorder %s15, 4
      %s23 = sphi 0, %s23
      %s25 = sphi 0, %s23
      %s26 = sphi 0, %s25
      %s40 = sphi 0, %s26
      %s46 = sphi 0, %s48
      %s49 = sphi 0, %s46
      %s50 = sphi 0, %s49
      %s66 = sphi 0, %s50
      %s72 = sphi 0, %s74
      %s75 = sphi 0, %s72
      %s76 = sphi 0, %s75
      %s92 = sphi 0, %s76
    $region4: #{tpu_custom_call.1} parent=1 // loop_header_branch
      %18 = sbr.rel (%p16) target = $region8
    $region5: #{tpu_custom_call.1} parent=1 // loop_body
      %s20 = ssub.s32 %s15, 1
      %s21 = ssub.s32 %s15, 2
      %s22 = sadd.s32 %s15, 1
      %s24 = sadd.s32 %s23, 1
      %p27 = scmp.eq.s32.totalorder %s15, 1
      %p28 = scmp.ne.s32.totalorder %s23, %s25
      %p29 = scmp.eq.s32.totalorder %s15, 0
      %p30 = por %p28, %p29
      %p31 = scmp.ne.s32.totalorder %s23, %s25
      %p32 = scmp.eq.s32.totalorder %s20, 1
      %p33 = por %p31, %p32
      %p34 = scmp.ne.s32.totalorder %s25, %s26
      %p35 = scmp.eq.s32.totalorder %s20, 0
      %p36 = por %p34, %p35
      %p37 = scmp.ne.s32.totalorder %s25, %s26
      %p38 = scmp.eq.s32.totalorder %s21, 1
      %p39 = por %p37, %p38
      %p41 = scmp.ne.s32.totalorder %s26, %s40
      %p42 = scmp.eq.s32.totalorder %s21, 0
      %p43 = por %p41, %p42
      %s44 = ssub.s32 %s15, %s22
      %p45 = scmp.eq.s32.totalorder %s44, 0
      %s47 = sadd.s32 %s46, 1
      %s48 = scalar_select %p45, %s46, %s47
      %p51 = pneg %p45
      %p52 = scmp.eq.s32.totalorder %s15, 1
      %p53 = por %p51, %p52
      %p54 = scmp.ne.s32.totalorder %s46, %s49
      %p55 = scmp.eq.s32.totalorder %s15, 0
      %p56 = por %p54, %p55
      %p57 = scmp.ne.s32.totalorder %s46, %s49
      %p58 = scmp.eq.s32.totalorder %s20, 1
      %p59 = por %p57, %p58
      %p60 = scmp.ne.s32.totalorder %s49, %s50
      %p61 = scmp.eq.s32.totalorder %s20, 0
      %p62 = por %p60, %p61
      %p63 = scmp.ne.s32.totalorder %s49, %s50
      %p64 = scmp.eq.s32.totalorder %s21, 1
      %p65 = por %p63, %p64
      %p67 = scmp.ne.s32.totalorder %s50, %s66
      %p68 = scmp.eq.s32.totalorder %s21, 0
      %p69 = por %p67, %p68
      %s70 = ssub.s32 %s15, %s22
      %p71 = scmp.eq.s32.totalorder %s70, 0
      %s73 = sadd.s32 %s72, 1
      %s74 = scalar_select %p71, %s72, %s73
      %p77 = pneg %p71
      %p78 = scmp.eq.s32.totalorder %s15, 1
      %p79 = por %p77, %p78
      %p80 = scmp.ne.s32.totalorder %s72, %s75
      %p81 = scmp.eq.s32.totalorder %s15, 0
      %p82 = por %p80, %p81
      %p83 = scmp.ne.s32.totalorder %s72, %s75
      %p84 = scmp.eq.s32.totalorder %s20, 1
      %p85 = por %p83, %p84
      %p86 = scmp.ne.s32.totalorder %s75, %s76
      %p87 = scmp.eq.s32.totalorder %s20, 0
      %p88 = por %p86, %p87
      %p89 = scmp.ne.s32.totalorder %s75, %s76
      %p90 = scmp.eq.s32.totalorder %s21, 1
      %p91 = por %p89, %p90
      %p93 = scmp.ne.s32.totalorder %s76, %s92
      %p94 = scmp.eq.s32.totalorder %s21, 0
      %p95 = por %p93, %p94
      %p96 = scmp.le.s32.totalorder 1, %s15
      %p97 = scmp.lt.s32.totalorder %s15, 3
      %p98 = pnand %p96, %p97
      %p99 = pneg %p98
      // Predicated region
      $region9: #{tpu_custom_call.1} parent=5 // pred_check
        _
      $region10: #{tpu_custom_call.1} parent=5 // pred_check_branch
        %101 = sbr.rel (%p98) target = $region12
      $region11: #{tpu_custom_call.1} parent=5 // pred_region
        %s102 = ssub.s32 %s15, 1
        // Predicated region
        $region13: #{tpu_custom_call.1} parent=11 // pred_check
          %p103 = pneg %p36
        $region14: #{tpu_custom_call.1} parent=11 // pred_check_branch
          %105 = sbr.rel (%p103) target = $region16
        $region15: #{tpu_custom_call.1} parent=11 // pred_region
          %s107 = ssub.s32 16, 16
          %108 = vsyncadd [#allocation7], %s107
          %111 = dma.hbm_to_smem %s0, 16, [#allocation4], [#allocation7]
        $region16: #{tpu_custom_call.1} parent=11 // pred_fallthru
          _
      $region12: #{tpu_custom_call.1} parent=5 // pred_fallthru
        _
      %p112 = scmp.lt.s32.totalorder %s15, 2
      // Predicated region
      $region17: #{tpu_custom_call.1} parent=5 // pred_check
        %p113 = pneg %p112
      $region18: #{tpu_custom_call.1} parent=5 // pred_check_branch
        %115 = sbr.rel (%p113) target = $region20
      $region19: #{tpu_custom_call.1} parent=5 // pred_region
        // Predicated region
        $region21: #{tpu_custom_call.1} parent=19 // pred_check
          %p116 = pneg %p56
        $region22: #{tpu_custom_call.1} parent=19 // pred_check_branch
          %118 = sbr.rel (%p116) target = $region24
        $region23: #{tpu_custom_call.1} parent=19 // pred_region
          %s119 = sand.u32 %s46, 1
          %s120 = scalar_lea.sflag [#allocation5], %s119
          %s121 = sand.u32 %s46, 1
          %s122 = smul.addr %s121, 256
          %s123 = scalar_lea.vmem [#allocation8], %s122
          %s125 = ssub.s32 4096, 4096
          %126 = vsyncadd %s120, %s125
          %s127 = smul.addr %s15, 32
          %s128 = smul.addr %s127, 128
          %s129 = scalar_lea.hbm %s1, %s128
          %s130 = sshll.u32 %s123, 4
          %s131 = int_to_ptr.vmem [resolvable:$true] %s130
          %136 = dma.hbm_to_vmem [thread:$0]  %s129, 4096, %s131, %s120, 256, 256, 16
        $region24: #{tpu_custom_call.1} parent=19 // pred_fallthru
          _
      $region20: #{tpu_custom_call.1} parent=5 // pred_fallthru
        _
      %p137 = scmp.le.s32.totalorder 1, %s15
      %p138 = scmp.lt.s32.totalorder %s15, 3
      %p139 = pnand %p137, %p138
      %p140 = pneg %p139
      // Predicated region
      $region25: #{tpu_custom_call.1} parent=5 // pred_check
        _
      $region26: #{tpu_custom_call.1} parent=5 // pred_check_branch
        %142 = sbr.rel (%p139) target = $region28
      $region27: #{tpu_custom_call.1} parent=5 // pred_region
        %s143 = ssub.s32 %s15, 1
        // Predicated region
        $region29: #{tpu_custom_call.1} parent=27 // pred_check
          %p144 = pneg %p36
        $region30: #{tpu_custom_call.1} parent=27 // pred_check_branch
          %146 = sbr.rel (%p144) target = $region32
        $region31: #{tpu_custom_call.1} parent=27 // pred_region
          %147 = dma.done [#allocation7], 16
        $region32: #{tpu_custom_call.1} parent=27 // pred_fallthru
          _
        %s148 = sand.u32 %s49, 1
        %s149 = scalar_lea.sflag [#allocation5], %s148
        %s150 = sand.u32 %s49, 1
        %s151 = smul.addr %s150, 256
        %s152 = scalar_lea.vmem [#allocation8], %s151
        // Predicated region
        $region33: #{tpu_custom_call.1} parent=27 // pred_check
          %p153 = pneg %p62
        $region34: #{tpu_custom_call.1} parent=27 // pred_check_branch
          %155 = sbr.rel (%p153) target = $region36
        $region35: #{tpu_custom_call.1} parent=27 // pred_region
          %156 = dma.done %s149, 4096
        $region36: #{tpu_custom_call.1} parent=27 // pred_fallthru
          _
        %157 = sfence
        %p158 = pneg %p36
        %p159 = pneg %p33
        %s160 = sand.u32 %s49, 1
        %s161 = scalar_lea.sflag [#allocation5], %s160
        %s162 = sand.u32 %s49, 1
        %s163 = smul.addr %s162, 256
        %s164 = scalar_lea.vmem [#allocation8], %s163
        %p165 = pneg %p62
        %p166 = pneg %p59
        %p167 = pneg %p88
        %p168 = pneg %p85
        %s169 = sand.u32 %s75, 1
        %s170 = scalar_lea.sflag [#allocation6], %s169
        %s171 = sand.u32 %s75, 1
        %s172 = smul.addr %s171, 256
        %s173 = scalar_lea.vmem [#allocation9], %s172
        %174 = vst [vmem:[#allocation3] sm:$0xff] 0.0
        %175 = vst [vmem:[#allocation3 + $0x8] sm:$0xff] 0.0
        %176 = vst [vmem:[#allocation3 + $0x10] sm:$0xff] 0.0
        %177 = vst [vmem:[#allocation3 + $0x18] sm:$0xff] 0.0
        %178 = vst [vmem:[#allocation3 + $0x20] sm:$0xff] 0.0
        %179 = vst [vmem:[#allocation3 + $0x28] sm:$0xff] 0.0
        %180 = vst [vmem:[#allocation3 + $0x30] sm:$0xff] 0.0
        %181 = vst [vmem:[#allocation3 + $0x38] sm:$0xff] 0.0
        %182 = vst [vmem:[#allocation3 + $0x40] sm:$0xff] 0.0
        %183 = vst [vmem:[#allocation3 + $0x48] sm:$0xff] 0.0
        %184 = vst [vmem:[#allocation3 + $0x50] sm:$0xff] 0.0
        %185 = vst [vmem:[#allocation3 + $0x58] sm:$0xff] 0.0
        %186 = vst [vmem:[#allocation3 + $0x60] sm:$0xff] 0.0
        %187 = vst [vmem:[#allocation3 + $0x68] sm:$0xff] 0.0
        %188 = vst [vmem:[#allocation3 + $0x70] sm:$0xff] 0.0
        %189 = vst [vmem:[#allocation3 + $0x78] sm:$0xff] 0.0
        %v190 = vld [vmem:[#allocation3] sm:$0xff]
        %v191 = vld [vmem:[#allocation3 + $0x8] sm:$0xff]
        %v192 = vld [vmem:[#allocation3 + $0x10] sm:$0xff]
        %v193 = vld [vmem:[#allocation3 + $0x18] sm:$0xff]
        %v194 = vld [vmem:[#allocation3 + $0x20] sm:$0xff]
        %v195 = vld [vmem:[#allocation3 + $0x28] sm:$0xff]
        %v196 = vld [vmem:[#allocation3 + $0x30] sm:$0xff]
        %v197 = vld [vmem:[#allocation3 + $0x38] sm:$0xff]
        %v198 = vld [vmem:[#allocation3 + $0x40] sm:$0xff]
        %v199 = vld [vmem:[#allocation3 + $0x48] sm:$0xff]
        %v200 = vld [vmem:[#allocation3 + $0x50] sm:$0xff]
        %v201 = vld [vmem:[#allocation3 + $0x58] sm:$0xff]
        %v202 = vld [vmem:[#allocation3 + $0x60] sm:$0xff]
        %v203 = vld [vmem:[#allocation3 + $0x68] sm:$0xff]
        %v204 = vld [vmem:[#allocation3 + $0x70] sm:$0xff]
        %v205 = vld [vmem:[#allocation3 + $0x78] sm:$0xff]
        %v206 = vld [vmem:[%s152] sm:$0xff]
        %v207 = vld [vmem:[%s152 + $0x10] sm:$0xff]
        %v208 = vld [vmem:[%s152 + $0x20] sm:$0xff]
        %v209 = vld [vmem:[%s152 + $0x30] sm:$0xff]
        %v210 = vld [vmem:[%s152 + $0x40] sm:$0xff]
        %v211 = vld [vmem:[%s152 + $0x50] sm:$0xff]
        %v212 = vld [vmem:[%s152 + $0x60] sm:$0xff]
        %v213 = vld [vmem:[%s152 + $0x70] sm:$0xff]
        %v214 = vld [vmem:[%s152 + $0x80] sm:$0xff]
        %v215 = vld [vmem:[%s152 + $0x90] sm:$0xff]
        %v216 = vld [vmem:[%s152 + $0xa0] sm:$0xff]
        %v217 = vld [vmem:[%s152 + $0xb0] sm:$0xff]
        %v218 = vld [vmem:[%s152 + $0xc0] sm:$0xff]
        %v219 = vld [vmem:[%s152 + $0xd0] sm:$0xff]
        %v220 = vld [vmem:[%s152 + $0xe0] sm:$0xff]
        %v221 = vld [vmem:[%s152 + $0xf0] sm:$0xff]
        %v222 = vadd.f32 %v190, %v206
        %v223 = vadd.f32 %v191, %v207
        %v224 = vadd.f32 %v192, %v208
        %v225 = vadd.f32 %v193, %v209
        %v226 = vadd.f32 %v194, %v210
        %v227 = vadd.f32 %v195, %v211
        %v228 = vadd.f32 %v196, %v212
        %v229 = vadd.f32 %v197, %v213
        %v230 = vadd.f32 %v198, %v214
        %v231 = vadd.f32 %v199, %v215
        %v232 = vadd.f32 %v200, %v216
        %v233 = vadd.f32 %v201, %v217
        %v234 = vadd.f32 %v202, %v218
        %v235 = vadd.f32 %v203, %v219
        %v236 = vadd.f32 %v204, %v220
        %v237 = vadd.f32 %v205, %v221
        %238 = vst [vmem:[#allocation3] sm:$0xff] %v222
        %239 = vst [vmem:[#allocation3 + $0x8] sm:$0xff] %v223
        %240 = vst [vmem:[#allocation3 + $0x10] sm:$0xff] %v224
        %241 = vst [vmem:[#allocation3 + $0x18] sm:$0xff] %v225
        %242 = vst [vmem:[#allocation3 + $0x20] sm:$0xff] %v226
        %243 = vst [vmem:[#allocation3 + $0x28] sm:$0xff] %v227
        %244 = vst [vmem:[#allocation3 + $0x30] sm:$0xff] %v228
        %245 = vst [vmem:[#allocation3 + $0x38] sm:$0xff] %v229
        %246 = vst [vmem:[#allocation3 + $0x40] sm:$0xff] %v230
        %247 = vst [vmem:[#allocation3 + $0x48] sm:$0xff] %v231
        %248 = vst [vmem:[#allocation3 + $0x50] sm:$0xff] %v232
        %249 = vst [vmem:[#allocation3 + $0x58] sm:$0xff] %v233
        %250 = vst [vmem:[#allocation3 + $0x60] sm:$0xff] %v234
        %251 = vst [vmem:[#allocation3 + $0x68] sm:$0xff] %v235
        %252 = vst [vmem:[#allocation3 + $0x70] sm:$0xff] %v236
        %253 = vst [vmem:[#allocation3 + $0x78] sm:$0xff] %v237
        %v254 = vld [vmem:[#allocation3] sm:$0xff]
        %v255 = vld [vmem:[#allocation3 + $0x8] sm:$0xff]
        %v256 = vld [vmem:[#allocation3 + $0x10] sm:$0xff]
        %v257 = vld [vmem:[#allocation3 + $0x18] sm:$0xff]
        %v258 = vld [vmem:[#allocation3 + $0x20] sm:$0xff]
        %v259 = vld [vmem:[#allocation3 + $0x28] sm:$0xff]
        %v260 = vld [vmem:[#allocation3 + $0x30] sm:$0xff]
        %v261 = vld [vmem:[#allocation3 + $0x38] sm:$0xff]
        %v262 = vld [vmem:[#allocation3 + $0x40] sm:$0xff]
        %v263 = vld [vmem:[#allocation3 + $0x48] sm:$0xff]
        %v264 = vld [vmem:[#allocation3 + $0x50] sm:$0xff]
        %v265 = vld [vmem:[#allocation3 + $0x58] sm:$0xff]
        %v266 = vld [vmem:[#allocation3 + $0x60] sm:$0xff]
        %v267 = vld [vmem:[#allocation3 + $0x68] sm:$0xff]
        %v268 = vld [vmem:[#allocation3 + $0x70] sm:$0xff]
        %v269 = vld [vmem:[#allocation3 + $0x78] sm:$0xff]
        %v270 = vld [vmem:[%s152 + $0x8] sm:$0xff]
        %v271 = vld [vmem:[%s152 + $0x18] sm:$0xff]
        %v272 = vld [vmem:[%s152 + $0x28] sm:$0xff]
        %v273 = vld [vmem:[%s152 + $0x38] sm:$0xff]
        %v274 = vld [vmem:[%s152 + $0x48] sm:$0xff]
        %v275 = vld [vmem:[%s152 + $0x58] sm:$0xff]
        %v276 = vld [vmem:[%s152 + $0x68] sm:$0xff]
        %v277 = vld [vmem:[%s152 + $0x78] sm:$0xff]
        %v278 = vld [vmem:[%s152 + $0x88] sm:$0xff]
        %v279 = vld [vmem:[%s152 + $0x98] sm:$0xff]
        %v280 = vld [vmem:[%s152 + $0xa8] sm:$0xff]
        %v281 = vld [vmem:[%s152 + $0xb8] sm:$0xff]
        %v282 = vld [vmem:[%s152 + $0xc8] sm:$0xff]
        %v283 = vld [vmem:[%s152 + $0xd8] sm:$0xff]
        %v284 = vld [vmem:[%s152 + $0xe8] sm:$0xff]
        %v285 = vld [vmem:[%s152 + $0xf8] sm:$0xff]
        %v286 = vadd.f32 %v254, %v270
        %v287 = vadd.f32 %v255, %v271
        %v288 = vadd.f32 %v256, %v272
        %v289 = vadd.f32 %v257, %v273
        %v290 = vadd.f32 %v258, %v274
        %v291 = vadd.f32 %v259, %v275
        %v292 = vadd.f32 %v260, %v276
        %v293 = vadd.f32 %v261, %v277
        %v294 = vadd.f32 %v262, %v278
        %v295 = vadd.f32 %v263, %v279
        %v296 = vadd.f32 %v264, %v280
        %v297 = vadd.f32 %v265, %v281
        %v298 = vadd.f32 %v266, %v282
        %v299 = vadd.f32 %v267, %v283
        %v300 = vadd.f32 %v268, %v284
        %v301 = vadd.f32 %v269, %v285
        %302 = vst [vmem:[#allocation3] sm:$0xff] %v286
        %303 = vst [vmem:[#allocation3 + $0x8] sm:$0xff] %v287
        %304 = vst [vmem:[#allocation3 + $0x10] sm:$0xff] %v288
        %305 = vst [vmem:[#allocation3 + $0x18] sm:$0xff] %v289
        %306 = vst [vmem:[#allocation3 + $0x20] sm:$0xff] %v290
        %307 = vst [vmem:[#allocation3 + $0x28] sm:$0xff] %v291
        %308 = vst [vmem:[#allocation3 + $0x30] sm:$0xff] %v292
        %309 = vst [vmem:[#allocation3 + $0x38] sm:$0xff] %v293
        %310 = vst [vmem:[#allocation3 + $0x40] sm:$0xff] %v294
        %311 = vst [vmem:[#allocation3 + $0x48] sm:$0xff] %v295
        %312 = vst [vmem:[#allocation3 + $0x50] sm:$0xff] %v296
        %313 = vst [vmem:[#allocation3 + $0x58] sm:$0xff] %v297
        %314 = vst [vmem:[#allocation3 + $0x60] sm:$0xff] %v298
        %315 = vst [vmem:[#allocation3 + $0x68] sm:$0xff] %v299
        %316 = vst [vmem:[#allocation3 + $0x70] sm:$0xff] %v300
        %317 = vst [vmem:[#allocation3 + $0x78] sm:$0xff] %v301
        %v318 = vld [vmem:[#allocation3] sm:$0xff]
        %v319 = vld [vmem:[#allocation3 + $0x8] sm:$0xff]
        %v320 = vld [vmem:[#allocation3 + $0x10] sm:$0xff]
        %v321 = vld [vmem:[#allocation3 + $0x18] sm:$0xff]
        %v322 = vld [vmem:[#allocation3 + $0x20] sm:$0xff]
        %v323 = vld [vmem:[#allocation3 + $0x28] sm:$0xff]
        %v324 = vld [vmem:[#allocation3 + $0x30] sm:$0xff]
        %v325 = vld [vmem:[#allocation3 + $0x38] sm:$0xff]
        %v326 = vld [vmem:[#allocation3 + $0x40] sm:$0xff]
        %v327 = vld [vmem:[#allocation3 + $0x48] sm:$0xff]
        %v328 = vld [vmem:[#allocation3 + $0x50] sm:$0xff]
        %v329 = vld [vmem:[#allocation3 + $0x58] sm:$0xff]
        %v330 = vld [vmem:[#allocation3 + $0x60] sm:$0xff]
        %v331 = vld [vmem:[#allocation3 + $0x68] sm:$0xff]
        %v332 = vld [vmem:[#allocation3 + $0x70] sm:$0xff]
        %v333 = vld [vmem:[#allocation3 + $0x78] sm:$0xff]
        %334 = vadd.xlane.f32.xlu0 %v318
        %v335 = vpop.xlane.xlu0 %334
        %336 = vadd.xlane.f32.xlu0 %v319
        %v337 = vpop.xlane.xlu0 %336
        %338 = vadd.xlane.f32.xlu0 %v320
        %v339 = vpop.xlane.xlu0 %338
        %340 = vadd.xlane.f32.xlu0 %v321
        %v341 = vpop.xlane.xlu0 %340
        %342 = vadd.xlane.f32.xlu0 %v322
        %v343 = vpop.xlane.xlu0 %342
        %344 = vadd.xlane.f32.xlu0 %v323
        %v345 = vpop.xlane.xlu0 %344
        %346 = vadd.xlane.f32.xlu0 %v324
        %v347 = vpop.xlane.xlu0 %346
        %348 = vadd.xlane.f32.xlu0 %v325
        %v349 = vpop.xlane.xlu0 %348
        %350 = vadd.xlane.f32.xlu0 %v326
        %v351 = vpop.xlane.xlu0 %350
        %352 = vadd.xlane.f32.xlu0 %v327
        %v353 = vpop.xlane.xlu0 %352
        %354 = vadd.xlane.f32.xlu0 %v328
        %v355 = vpop.xlane.xlu0 %354
        %356 = vadd.xlane.f32.xlu0 %v329
        %v357 = vpop.xlane.xlu0 %356
        %358 = vadd.xlane.f32.xlu0 %v330
        %v359 = vpop.xlane.xlu0 %358
        %360 = vadd.xlane.f32.xlu0 %v331
        %v361 = vpop.xlane.xlu0 %360
        %362 = vadd.xlane.f32.xlu0 %v332
        %v363 = vpop.xlane.xlu0 %362
        %364 = vadd.xlane.f32.xlu0 %v333
        %v365 = vpop.xlane.xlu0 %364
        %v366 = vmul.f32 %v335, 0.00390625
        %v367 = vmul.f32 %v337, 0.00390625
        %v368 = vmul.f32 %v339, 0.00390625
        %v369 = vmul.f32 %v341, 0.00390625
        %v370 = vmul.f32 %v343, 0.00390625
        %v371 = vmul.f32 %v345, 0.00390625
        %v372 = vmul.f32 %v347, 0.00390625
        %v373 = vmul.f32 %v349, 0.00390625
        %v374 = vmul.f32 %v351, 0.00390625
        %v375 = vmul.f32 %v353, 0.00390625
        %v376 = vmul.f32 %v355, 0.00390625
        %v377 = vmul.f32 %v357, 0.00390625
        %v378 = vmul.f32 %v359, 0.00390625
        %v379 = vmul.f32 %v361, 0.00390625
        %v380 = vmul.f32 %v363, 0.00390625
        %v381 = vmul.f32 %v365, 0.00390625
        %vm382 = vcmask 80896
        %383 = vst.msk [vmem:[#allocation2] sm:$0xff] %vm382, 0.0
        %384 = vst.msk [vmem:[#allocation2 + $0x8] sm:$0xff] %vm382, 0.0
        %vm385 = vcmask 74752
        %386 = vst.msk [vmem:[#allocation2 + $0x10] sm:$0x3] %vm385, 0.0
        %v403 = vlaneseq
        %v404 = vand.u32 %v403, 127
        %v405 = vadd.s32 %v404, 4294967295
        %v406 = vlaneseq
        %v407 = vshrl.u32 %v406, 7
        %v408 = vsub.s32 %v405, %v407
        %v409 = vrot.slane %v366, %v408
        %v410 = vlaneseq
        %v411 = vshrl.u32 %v410, 7
        %v412 = vsub.s32 %v405, %v411
        %v413 = vrot.slane %v367, %v412
        %v414 = vlaneseq
        %v415 = vshrl.u32 %v414, 7
        %v416 = vsub.s32 %v405, %v415
        %v417 = vrot.slane %v368, %v416
        %v418 = vlaneseq
        %v419 = vshrl.u32 %v418, 7
        %v420 = vsub.s32 %v405, %v419
        %v421 = vrot.slane %v369, %v420
        %v422 = vlaneseq
        %v423 = vshrl.u32 %v422, 7
        %v424 = vsub.s32 %v405, %v423
        %v425 = vrot.slane %v370, %v424
        %v426 = vlaneseq
        %v427 = vshrl.u32 %v426, 7
        %v428 = vsub.s32 %v405, %v427
        %v429 = vrot.slane %v371, %v428
        %v430 = vlaneseq
        %v431 = vshrl.u32 %v430, 7
        %v432 = vsub.s32 %v405, %v431
        %v433 = vrot.slane %v372, %v432
        %v434 = vlaneseq
        %v435 = vshrl.u32 %v434, 7
        %v436 = vsub.s32 %v405, %v435
        %v437 = vrot.slane %v373, %v436
        %v438 = vlaneseq
        %v439 = vshrl.u32 %v438, 7
        %v440 = vsub.s32 %v405, %v439
        %v441 = vrot.slane %v374, %v440
        %v442 = vlaneseq
        %v443 = vshrl.u32 %v442, 7
        %v444 = vsub.s32 %v405, %v443
        %v445 = vrot.slane %v375, %v444
        %v446 = vlaneseq
        %v447 = vshrl.u32 %v446, 7
        %v448 = vsub.s32 %v405, %v447
        %v449 = vrot.slane %v376, %v448
        %v450 = vlaneseq
        %v451 = vshrl.u32 %v450, 7
        %v452 = vsub.s32 %v405, %v451
        %v453 = vrot.slane %v377, %v452
        %v454 = vlaneseq
        %v455 = vshrl.u32 %v454, 7
        %v456 = vsub.s32 %v405, %v455
        %v457 = vrot.slane %v378, %v456
        %v458 = vlaneseq
        %v459 = vshrl.u32 %v458, 7
        %v460 = vsub.s32 %v405, %v459
        %v461 = vrot.slane %v379, %v460
        %v462 = vlaneseq
        %v463 = vshrl.u32 %v462, 7
        %v464 = vsub.s32 %v405, %v463
        %v465 = vrot.slane %v380, %v464
        %v466 = vlaneseq
        %v467 = vshrl.u32 %v466, 7
        %v468 = vsub.s32 %v405, %v467
        %v469 = vrot.slane %v381, %v468
        %vm470 = vcmask 1041409
        %v471 = vsel %vm470, %v413, %v409
        %vm472 = vcmask 1042434
        %v473 = vsel %vm472, %v417, %v471
        %vm474 = vcmask 1043459
        %v475 = vsel %vm474, %v421, %v473
        %vm476 = vcmask 1044484
        %v477 = vsel %vm476, %v425, %v475
        %vm478 = vcmask 1045509
        %v479 = vsel %vm478, %v429, %v477
        %vm480 = vcmask 1046534
        %v481 = vsel %vm480, %v433, %v479
        %vm482 = vcmask 1047559
        %v483 = vsel %vm482, %v437, %v481
        %v484 = vsel %vm470, %v445, %v441
        %v485 = vsel %vm472, %v449, %v484
        %v486 = vsel %vm474, %v453, %v485
        %v487 = vsel %vm476, %v457, %v486
        %v488 = vsel %vm478, %v461, %v487
        %v489 = vsel %vm480, %v465, %v488
        %v490 = vsel %vm482, %v469, %v489
        %vm493 = vcmask 72712
        %494 = vst.msk [vmem:[#allocation2 + $0x1] sm:$0xff] %vm493, %v483
        %495 = vst.msk [vmem:[#allocation2 + $0x9] sm:$0xff] %vm493, %v490
        %s496 = sld [smem:[#allocation4]]
        %v497 = vld [vmem:[#allocation2] sm:$0xff]
        %v498 = vld [vmem:[#allocation2 + $0x8] sm:$0xff]
        %v499 = vstv %s496
        %v500 = vmul.f32 %v499, %v497
        %v501 = vmul.f32 %v499, %v498
        %v502 = vadd.f32 %v500, 0.0
        %v503 = vadd.f32 %v501, 0.0
        %s504 = sld [smem:[#allocation4 + $0x1]]
        %v505 = vstv %s504
        %v506 = vmul.f32 %v505, %v497
        %v507 = vmul.f32 %v505, %v498
        %510 = vrot.lane.b32.xlu0 %v506, 127
        %v511 = vpop.permute.xlu0 %510
        %512 = vrot.lane.b32.xlu0 %v507, 127
        %v513 = vpop.permute.xlu0 %512
        %v516 = vadd.f32 %v502, %v511
        %v517 = vadd.f32 %v503, %v513
        %s518 = sld [smem:[#allocation4 + $0x2]]
        %v519 = vstv %s518
        %v520 = vmul.f32 %v519, %v497
        %v521 = vmul.f32 %v519, %v498
        %524 = vrot.lane.b32.xlu0 %v520, 126
        %v525 = vpop.permute.xlu0 %524
        %526 = vrot.lane.b32.xlu0 %v521, 126
        %v527 = vpop.permute.xlu0 %526
        %v530 = vadd.f32 %v516, %v525
        %v531 = vadd.f32 %v517, %v527
        %s532 = sld [smem:[#allocation4 + $0x3]]
        %v533 = vld [vmem:[#allocation2 + $0x1] sm:$0xff]
        %v534 = vld [vmem:[#allocation2 + $0x9] sm:$0xff]
        %v535 = vstv %s532
        %v536 = vmul.f32 %v535, %v533
        %v537 = vmul.f32 %v535, %v534
        %v538 = vadd.f32 %v530, %v536
        %v539 = vadd.f32 %v531, %v537
        %s540 = sld [smem:[#allocation4 + $0x4]]
        %v541 = vstv %s540
        %v542 = vmul.f32 %v541, %v533
        %v543 = vmul.f32 %v541, %v534
        %546 = vrot.lane.b32.xlu0 %v542, 127
        %v547 = vpop.permute.xlu0 %546
        %548 = vrot.lane.b32.xlu0 %v543, 127
        %v549 = vpop.permute.xlu0 %548
        %v552 = vadd.f32 %v538, %v547
        %v553 = vadd.f32 %v539, %v549
        %s554 = sld [smem:[#allocation4 + $0x5]]
        %v555 = vstv %s554
        %v556 = vmul.f32 %v555, %v533
        %v557 = vmul.f32 %v555, %v534
        %560 = vrot.lane.b32.xlu0 %v556, 126
        %v561 = vpop.permute.xlu0 %560
        %562 = vrot.lane.b32.xlu0 %v557, 126
        %v563 = vpop.permute.xlu0 %562
        %v566 = vadd.f32 %v552, %v561
        %v567 = vadd.f32 %v553, %v563
        %s568 = sld [smem:[#allocation4 + $0x6]]
        %v569 = vld [vmem:[#allocation2 + $0x2] sm:$0xff]
        %v570 = vld [vmem:[#allocation2 + $0xa] sm:$0xff]
        %v571 = vstv %s568
        %v572 = vmul.f32 %v571, %v569
        %v573 = vmul.f32 %v571, %v570
        %v574 = vadd.f32 %v566, %v572
        %v575 = vadd.f32 %v567, %v573
        %s576 = sld [smem:[#allocation4 + $0x7]]
        %v577 = vstv %s576
        %v578 = vmul.f32 %v577, %v569
        %v579 = vmul.f32 %v577, %v570
        %582 = vrot.lane.b32.xlu0 %v578, 127
        %v583 = vpop.permute.xlu0 %582
        %584 = vrot.lane.b32.xlu0 %v579, 127
        %v585 = vpop.permute.xlu0 %584
        %v588 = vadd.f32 %v574, %v583
        %v589 = vadd.f32 %v575, %v585
        %s590 = sld [smem:[#allocation4 + $0x8]]
        %v591 = vstv %s590
        %v592 = vmul.f32 %v591, %v569
        %v593 = vmul.f32 %v591, %v570
        %596 = vrot.lane.b32.xlu0 %v592, 126
        %v597 = vpop.permute.xlu0 %596
        %598 = vrot.lane.b32.xlu0 %v593, 126
        %v599 = vpop.permute.xlu0 %598
        %v602 = vadd.f32 %v588, %v597
        %v603 = vadd.f32 %v589, %v599
        %v604 = vxor.u32 %v602, 2147483648
        %v605 = vxor.u32 %v603, 2147483648
        %v606 = vmul.f32 %v604, 1.442695
        %v607 = vpow.pop %v606
        %v608 = vmul.f32 %v605, 1.442695
        %v609 = vpow.pop %v608
        %v610 = vadd.f32 %v607, 1.0
        %v611 = vadd.f32 %v609, 1.0
        %v612 = vrcp.pop %v610
        %v613 = vmul.f32 1.0, %v612
        %v614 = vrcp.pop %v611
        %v615 = vmul.f32 1.0, %v614
        %v616 = vlaneseq
        %v617 = vshrl.u32 %v616, 7
        %v618 = vsub.s32 0, %v617
        %v619 = vrot.slane %v613, %v618
        %621 = vbcast.lane.b32.xlu0 %v619, 256
        %v622 = vpop.permute.xlu0 %621
        %v623 = vlaneseq
        %v624 = vshrl.u32 %v623, 7
        %v625 = vsub.s32 1, %v624
        %v626 = vrot.slane %v613, %v625
        %628 = vbcast.lane.b32.xlu0 %v626, 256
        %v629 = vpop.permute.xlu0 %628
        %v630 = vlaneseq
        %v631 = vshrl.u32 %v630, 7
        %v632 = vsub.s32 2, %v631
        %v633 = vrot.slane %v613, %v632
        %635 = vbcast.lane.b32.xlu0 %v633, 256
        %v636 = vpop.permute.xlu0 %635
        %v637 = vlaneseq
        %v638 = vshrl.u32 %v637, 7
        %v639 = vsub.s32 3, %v638
        %v640 = vrot.slane %v613, %v639
        %642 = vbcast.lane.b32.xlu0 %v640, 256
        %v643 = vpop.permute.xlu0 %642
        %v644 = vlaneseq
        %v645 = vshrl.u32 %v644, 7
        %v646 = vsub.s32 4, %v645
        %v647 = vrot.slane %v613, %v646
        %649 = vbcast.lane.b32.xlu0 %v647, 256
        %v650 = vpop.permute.xlu0 %649
        %v651 = vlaneseq
        %v652 = vshrl.u32 %v651, 7
        %v653 = vsub.s32 5, %v652
        %v654 = vrot.slane %v613, %v653
        %656 = vbcast.lane.b32.xlu0 %v654, 256
        %v657 = vpop.permute.xlu0 %656
        %v658 = vlaneseq
        %v659 = vshrl.u32 %v658, 7
        %v660 = vsub.s32 6, %v659
        %v661 = vrot.slane %v613, %v660
        %663 = vbcast.lane.b32.xlu0 %v661, 256
        %v664 = vpop.permute.xlu0 %663
        %v665 = vlaneseq
        %v666 = vshrl.u32 %v665, 7
        %v667 = vsub.s32 7, %v666
        %v668 = vrot.slane %v613, %v667
        %670 = vbcast.lane.b32.xlu0 %v668, 256
        %v671 = vpop.permute.xlu0 %670
        %v672 = vlaneseq
        %v673 = vshrl.u32 %v672, 7
        %v674 = vsub.s32 0, %v673
        %v675 = vrot.slane %v615, %v674
        %677 = vbcast.lane.b32.xlu0 %v675, 256
        %v678 = vpop.permute.xlu0 %677
        %v679 = vlaneseq
        %v680 = vshrl.u32 %v679, 7
        %v681 = vsub.s32 1, %v680
        %v682 = vrot.slane %v615, %v681
        %684 = vbcast.lane.b32.xlu0 %v682, 256
        %v685 = vpop.permute.xlu0 %684
        %v686 = vlaneseq
        %v687 = vshrl.u32 %v686, 7
        %v688 = vsub.s32 2, %v687
        %v689 = vrot.slane %v615, %v688
        %691 = vbcast.lane.b32.xlu0 %v689, 256
        %v692 = vpop.permute.xlu0 %691
        %v693 = vlaneseq
        %v694 = vshrl.u32 %v693, 7
        %v695 = vsub.s32 3, %v694
        %v696 = vrot.slane %v615, %v695
        %698 = vbcast.lane.b32.xlu0 %v696, 256
        %v699 = vpop.permute.xlu0 %698
        %v700 = vlaneseq
        %v701 = vshrl.u32 %v700, 7
        %v702 = vsub.s32 4, %v701
        %v703 = vrot.slane %v615, %v702
        %705 = vbcast.lane.b32.xlu0 %v703, 256
        %v706 = vpop.permute.xlu0 %705
        %v707 = vlaneseq
        %v708 = vshrl.u32 %v707, 7
        %v709 = vsub.s32 5, %v708
        %v710 = vrot.slane %v615, %v709
        %712 = vbcast.lane.b32.xlu0 %v710, 256
        %v713 = vpop.permute.xlu0 %712
        %v714 = vlaneseq
        %v715 = vshrl.u32 %v714, 7
        %v716 = vsub.s32 6, %v715
        %v717 = vrot.slane %v615, %v716
        %719 = vbcast.lane.b32.xlu0 %v717, 256
        %v720 = vpop.permute.xlu0 %719
        %v721 = vlaneseq
        %v722 = vshrl.u32 %v721, 7
        %v723 = vsub.s32 7, %v722
        %v724 = vrot.slane %v615, %v723
        %726 = vbcast.lane.b32.xlu0 %v724, 256
        %v727 = vpop.permute.xlu0 %726
        %v728 = vld [vmem:[%s152] sm:$0xff]
        %v729 = vld [vmem:[%s152 + $0x10] sm:$0xff]
        %v730 = vld [vmem:[%s152 + $0x20] sm:$0xff]
        %v731 = vld [vmem:[%s152 + $0x30] sm:$0xff]
        %v732 = vld [vmem:[%s152 + $0x40] sm:$0xff]
        %v733 = vld [vmem:[%s152 + $0x50] sm:$0xff]
        %v734 = vld [vmem:[%s152 + $0x60] sm:$0xff]
        %v735 = vld [vmem:[%s152 + $0x70] sm:$0xff]
        %v736 = vld [vmem:[%s152 + $0x80] sm:$0xff]
        %v737 = vld [vmem:[%s152 + $0x90] sm:$0xff]
        %v738 = vld [vmem:[%s152 + $0xa0] sm:$0xff]
        %v739 = vld [vmem:[%s152 + $0xb0] sm:$0xff]
        %v740 = vld [vmem:[%s152 + $0xc0] sm:$0xff]
        %v741 = vld [vmem:[%s152 + $0xd0] sm:$0xff]
        %v742 = vld [vmem:[%s152 + $0xe0] sm:$0xff]
        %v743 = vld [vmem:[%s152 + $0xf0] sm:$0xff]
        %v744 = vmul.f32 %v728, %v622
        %v745 = vmul.f32 %v729, %v629
        %v746 = vmul.f32 %v730, %v636
        %v747 = vmul.f32 %v731, %v643
        %v748 = vmul.f32 %v732, %v650
        %v749 = vmul.f32 %v733, %v657
        %v750 = vmul.f32 %v734, %v664
        %v751 = vmul.f32 %v735, %v671
        %v752 = vmul.f32 %v736, %v678
        %v753 = vmul.f32 %v737, %v685
        %v754 = vmul.f32 %v738, %v692
        %v755 = vmul.f32 %v739, %v699
        %v756 = vmul.f32 %v740, %v706
        %v757 = vmul.f32 %v741, %v713
        %v758 = vmul.f32 %v742, %v720
        %v759 = vmul.f32 %v743, %v727
        %760 = vst [vmem:[%s173] sm:$0xff] %v744
        %761 = vst [vmem:[%s173 + $0x10] sm:$0xff] %v745
        %762 = vst [vmem:[%s173 + $0x20] sm:$0xff] %v746
        %763 = vst [vmem:[%s173 + $0x30] sm:$0xff] %v747
        %764 = vst [vmem:[%s173 + $0x40] sm:$0xff] %v748
        %765 = vst [vmem:[%s173 + $0x50] sm:$0xff] %v749
        %766 = vst [vmem:[%s173 + $0x60] sm:$0xff] %v750
        %767 = vst [vmem:[%s173 + $0x70] sm:$0xff] %v751
        %768 = vst [vmem:[%s173 + $0x80] sm:$0xff] %v752
        %769 = vst [vmem:[%s173 + $0x90] sm:$0xff] %v753
        %770 = vst [vmem:[%s173 + $0xa0] sm:$0xff] %v754
        %771 = vst [vmem:[%s173 + $0xb0] sm:$0xff] %v755
        %772 = vst [vmem:[%s173 + $0xc0] sm:$0xff] %v756
        %773 = vst [vmem:[%s173 + $0xd0] sm:$0xff] %v757
        %774 = vst [vmem:[%s173 + $0xe0] sm:$0xff] %v758
        %775 = vst [vmem:[%s173 + $0xf0] sm:$0xff] %v759
        %v776 = vld [vmem:[%s152 + $0x8] sm:$0xff]
        %v777 = vld [vmem:[%s152 + $0x18] sm:$0xff]
        %v778 = vld [vmem:[%s152 + $0x28] sm:$0xff]
        %v779 = vld [vmem:[%s152 + $0x38] sm:$0xff]
        %v780 = vld [vmem:[%s152 + $0x48] sm:$0xff]
        %v781 = vld [vmem:[%s152 + $0x58] sm:$0xff]
        %v782 = vld [vmem:[%s152 + $0x68] sm:$0xff]
        %v783 = vld [vmem:[%s152 + $0x78] sm:$0xff]
        %v784 = vld [vmem:[%s152 + $0x88] sm:$0xff]
        %v785 = vld [vmem:[%s152 + $0x98] sm:$0xff]
        %v786 = vld [vmem:[%s152 + $0xa8] sm:$0xff]
        %v787 = vld [vmem:[%s152 + $0xb8] sm:$0xff]
        %v788 = vld [vmem:[%s152 + $0xc8] sm:$0xff]
        %v789 = vld [vmem:[%s152 + $0xd8] sm:$0xff]
        %v790 = vld [vmem:[%s152 + $0xe8] sm:$0xff]
        %v791 = vld [vmem:[%s152 + $0xf8] sm:$0xff]
        %v792 = vmul.f32 %v776, %v622
        %v793 = vmul.f32 %v777, %v629
        %v794 = vmul.f32 %v778, %v636
        %v795 = vmul.f32 %v779, %v643
        %v796 = vmul.f32 %v780, %v650
        %v797 = vmul.f32 %v781, %v657
        %v798 = vmul.f32 %v782, %v664
        %v799 = vmul.f32 %v783, %v671
        %v800 = vmul.f32 %v784, %v678
        %v801 = vmul.f32 %v785, %v685
        %v802 = vmul.f32 %v786, %v692
        %v803 = vmul.f32 %v787, %v699
        %v804 = vmul.f32 %v788, %v706
        %v805 = vmul.f32 %v789, %v713
        %v806 = vmul.f32 %v790, %v720
        %v807 = vmul.f32 %v791, %v727
        %808 = vst [vmem:[%s173 + $0x8] sm:$0xff] %v792
        %809 = vst [vmem:[%s173 + $0x18] sm:$0xff] %v793
        %810 = vst [vmem:[%s173 + $0x28] sm:$0xff] %v794
        %811 = vst [vmem:[%s173 + $0x38] sm:$0xff] %v795
        %812 = vst [vmem:[%s173 + $0x48] sm:$0xff] %v796
        %813 = vst [vmem:[%s173 + $0x58] sm:$0xff] %v797
        %814 = vst [vmem:[%s173 + $0x68] sm:$0xff] %v798
        %815 = vst [vmem:[%s173 + $0x78] sm:$0xff] %v799
        %816 = vst [vmem:[%s173 + $0x88] sm:$0xff] %v800
        %817 = vst [vmem:[%s173 + $0x98] sm:$0xff] %v801
        %818 = vst [vmem:[%s173 + $0xa8] sm:$0xff] %v802
        %819 = vst [vmem:[%s173 + $0xb8] sm:$0xff] %v803
        %820 = vst [vmem:[%s173 + $0xc8] sm:$0xff] %v804
        %821 = vst [vmem:[%s173 + $0xd8] sm:$0xff] %v805
        %822 = vst [vmem:[%s173 + $0xe8] sm:$0xff] %v806
        %823 = vst [vmem:[%s173 + $0xf8] sm:$0xff] %v807
        %s824 = sand.u32 %s75, 1
        %s825 = scalar_lea.sflag [#allocation6], %s824
        %s826 = sand.u32 %s75, 1
        %s827 = smul.addr %s826, 256
        %s828 = scalar_lea.vmem [#allocation9], %s827
        // Predicated region
        $region37: #{tpu_custom_call.1} parent=27 // pred_check
          %p829 = pneg %p85
        $region38: #{tpu_custom_call.1} parent=27 // pred_check_branch
          %831 = sbr.rel (%p829) target = $region40
        $region39: #{tpu_custom_call.1} parent=27 // pred_region
          %s833 = ssub.s32 4096, 4096
          %834 = vsyncadd %s825, %s833
          %s835 = smul.addr %s20, 32
          %s836 = smul.addr %s835, 128
          %s837 = scalar_lea.hbm %s2, %s836
          %s838 = sshll.u32 %s828, 4
          %s839 = int_to_ptr.vmem [resolvable:$true] %s838
          %844 = dma.vmem_to_hbm [thread:$0]  %s839, 4096, %s837, %s825, 256, 256, 16
        $region40: #{tpu_custom_call.1} parent=27 // pred_fallthru
          _
      $region28: #{tpu_custom_call.1} parent=5 // pred_fallthru
        _
      %p845 = scmp.le.s32.totalorder 2, %s15
      // Predicated region
      $region41: #{tpu_custom_call.1} parent=5 // pred_check
        %p846 = pneg %p845
      $region42: #{tpu_custom_call.1} parent=5 // pred_check_branch
        %848 = sbr.rel (%p846) target = $region44
      $region43: #{tpu_custom_call.1} parent=5 // pred_region
        %s849 = ssub.s32 %s15, 2
        // Predicated region
        $region45: #{tpu_custom_call.1} parent=43 // pred_check
          %p850 = pneg %p91
        $region46: #{tpu_custom_call.1} parent=43 // pred_check_branch
          %852 = sbr.rel (%p850) target = $region48
        $region47: #{tpu_custom_call.1} parent=43 // pred_region
          %s853 = sand.u32 %s76, 1
          %s854 = scalar_lea.sflag [#allocation6], %s853
          %s855 = sand.u32 %s76, 1
          %s856 = smul.addr %s855, 256
          %s857 = scalar_lea.vmem [#allocation9], %s856
          %858 = dma.done %s854, 4096
        $region48: #{tpu_custom_call.1} parent=43 // pred_fallthru
          _
      $region44: #{tpu_custom_call.1} parent=5 // pred_fallthru
        _
    $region6: #{tpu_custom_call.1} parent=1 // loop_footer
      %s19 = sadd.s32 1, %s15
    $region7: #{tpu_custom_call.1} parent=1 // loop_footer_branch
      %14 = sbr.rel target = $region3
    $region8: #{tpu_custom_call.1} parent=1 // loop_exit
      _
    %859 = vsyncpa [#allocation5], 1
    %s860 = scalar_lea.sflag [#allocation5], 1
    %861 = vsyncpa %s860, 1
    %862 = vsyncpa [#allocation6], 1
    %s863 = scalar_lea.sflag [#allocation6], 1
    %864 = vsyncpa %s863, 1
    %865 = vsyncpa [#allocation7], 1
    %s866 = scalar_lea.sflag [#allocation7], 1
    %867 = vsyncpa %s866, 1

</llo_original>
